<compile_context>
chip_gen: v7x
topology: tpu7x:2x2x1
jax: 0.10.0
libtpu: 0.0.40
codegen_flags: <defaults>
</compile_context>

<pallas_src>
import functools

import jax
import jax.numpy as jnp
from jax import lax
from jax.experimental import pallas as pl
from jax.experimental.pallas import tpu as pltpu


SMOOTH = 1e-5
LANES = 128
MAX_TILE = 65536               # lane cap per grid step (512 x 128-lane blocks)
STEP_OVERHEAD_BLOCKS = 64      # ~0.35us/step pipeline overhead, in 128px-block units


def _cdiv(a, b):
    return -(-a // b)


def _vmem_info():
    """(physical VMEM bytes, double-buffered input-window budget), generation aware."""
    cap = 64 * 1024 * 1024
    try:
        cap = int(pltpu.get_tpu_info().vmem_capacity_bytes)
    except Exception:
        pass
    # v5e/v6e (128 MiB) -> 48 MiB input budget; v7x (64 MiB) -> 32 MiB.
    budget = max(16 * 1024 * 1024, min(cap // 2, 48 * 1024 * 1024))
    return cap, budget


def _pick_tile(n_classes, hw, n_batch, score_bytes, tgt_bytes, budget_bytes,
               requested=None):
    """Choose (tile, n_splits, num_tiles).

    tile       : pixels per grid step, multiple of 128 (or hw if hw < 128)
    n_splits   : parallel split of the pixel axis (2 => both v7x TensorCores busy)
    num_tiles  : tiles covering hw; n_splits divides num_tiles exactly so the
                 grid never issues a phantom / fully-out-of-bounds block.
    """
    if hw <= LANES:
        return hw, 1, 1

    bpp = n_classes * score_bytes + tgt_bytes          # streamed bytes per pixel
    blocks_floor = hw // LANES
    cap_blocks = max(1, min(blocks_floor, MAX_TILE // LANES,
                            budget_bytes // (2 * bpp * LANES)))

    if requested is not None:
        cpt = max(1, min(requested // LANES, cap_blocks))
        nt = _cdiv(hw, cpt * LANES)
        return cpt * LANES, (2 if nt >= 2 and nt % 2 == 0 else 1), nt

    blocks_ceil = _cdiv(hw, LANES)
    if n_batch == 1:
        split_penalty = blocks_ceil                    # 2nd TC idle ~ 2x on v7x
    elif n_batch % 2 == 1:
        split_penalty = blocks_ceil // n_batch         # odd-batch imbalance
    else:
        split_penalty = 0

    nt_min = _cdiv(hw, cap_blocks * LANES)
    nt_cap = max(2 * nt_min, nt_min + 4)               # bounded search band
    best = None
    for cpt in range(cap_blocks, 0, -1):
        nt = _cdiv(hw, cpt * LANES)
        if nt > nt_cap:
            break                                      # tiles only shrink from here
        splittable = nt >= 2 and nt % 2 == 0
        # processed blocks (incl. ragged waste) + per-step overhead + split bonus
        cost = nt * cpt + STEP_OVERHEAD_BLOCKS * nt \
            + (0 if splittable else split_penalty)
        key = (cost, nt, -cpt)
        if best is None or key < best[0]:
            best = (key, cpt, nt, splittable)
    _, cpt, nt, splittable = best
    return cpt * LANES, (2 if splittable else 1), nt


def _dice_kernel(score_ref, tgt_ref, out_ref, *, apply_softmax, hw, tile,
                 tiles_per_split, unroll, ragged):
    """score_ref: (1, C, tile); tgt_ref: (1, 1, tile) int; out_ref: (1, 3, C, cw)."""
    p = pl.program_id(2)

    @pl.when(p == 0)
    def _():
        out_ref[...] = jnp.zeros_like(out_ref)

    C = score_ref.shape[1]
    cw = out_ref.shape[3]
    n_chunks = tile // cw
    g = pl.program_id(1) * tiles_per_split + p          # global tile index
    base = g * tile                                      # first pixel of this step

    # Hoisted iotas (JAX does not CSE broadcast_in_dim).
    cls_iota = lax.broadcasted_iota(jnp.int32, (C, cw), 0)
    lane_iota = lax.broadcasted_iota(jnp.int32, (1, cw), 1)

    def accumulate(masked):
        def body(k, carry):
            acc_i, acc_y, acc_z = carry
            off = pl.multiple_of(k * cw, cw)
            s = score_ref[0, :, pl.ds(off, cw)].astype(jnp.float32)   # (C, cw)
            t = tgt_ref[0, :, pl.ds(off, cw)].astype(jnp.int32)       # (1, cw)
            if apply_softmax:
                m = jnp.max(s, axis=0, keepdims=True)
                e = jnp.exp(s - m)
                s = e * pl.reciprocal(jnp.sum(e, axis=0, keepdims=True), approx=True)
            if masked:
                # Ragged tail: selects (not multiplies) so NaN/Inf garbage in the
                # out-of-range lanes is killed; class id C matches no one-hot row.
                valid = (base + off + lane_iota) < hw
                t = jnp.where(valid, t, jnp.int32(C))
                s = jnp.where(valid, s, 0.0)
            match = cls_iota == t                                      # (C, cw)
            acc_i = acc_i + jnp.where(match, s, 0.0)
            acc_y = acc_y + jnp.where(match, 1.0, 0.0)
            acc_z = acc_z + s * s
            return acc_i, acc_y, acc_z

        zeros = jnp.zeros((C, cw), jnp.float32)
        acc_i, acc_y, acc_z = lax.fori_loop(
            0, n_chunks, body, (zeros, zeros, zeros), unroll=unroll)
        out_ref[0, 0, :, :] = out_ref[0, 0, :, :] + acc_i
        out_ref[0, 1, :, :] = out_ref[0, 1, :, :] + acc_y
        out_ref[0, 2, :, :] = out_ref[0, 2, :, :] + acc_z

    if ragged:
        # Only the final global tile can straddle hw; every other step is mask-free.
        @pl.when(base + tile > hw)
        def _():
            accumulate(True)

        @pl.when(base + tile <= hw)
        def _():
            accumulate(False)
    else:
        accumulate(False)


def dice_loss_pallas(inputs, target, n_classes, weight=None, softmax=False, tile=None):
    """inputs: (N, C, H, W) float (f32 or bf16); target: (N, H, W) integer labels."""
    N, C, H, W = inputs.shape
    assert C == n_classes, f"predict C={C} & n_classes={n_classes} do not match"
    HW = H * W

    # Free reshapes only: keep score dtype (bf16 ok) and keep <=32-bit integer
    # targets in their original dtype (cast happens in-kernel on the (1, cw) row).
    scores = inputs.reshape(N, C, HW)
    tdt = target.dtype
    if not (jnp.issubdtype(tdt, jnp.integer) and jnp.dtype(tdt).itemsize <= 4):
        target = target.astype(jnp.int32)
    tgt = target.reshape(N, 1, HW)

    score_bytes = jnp.dtype(scores.dtype).itemsize
    tgt_bytes = jnp.dtype(tgt.dtype).itemsize
    vmem_cap, budget = _vmem_info()

    tile_sz, n_splits, num_tiles = _pick_tile(
        C, HW, N, score_bytes, tgt_bytes, budget, tile)
    tps = num_tiles // n_splits                      # exact by construction
    cw = LANES if tile_sz >= LANES else tile_sz
    n_chunks = tile_sz // cw
    unroll = max(1, min(8 if C <= 8 else (4 if C <= 32 else 2), n_chunks))
    ragged = (HW % tile_sz) != 0

    kernel = functools.partial(
        _dice_kernel, apply_softmax=softmax, hw=HW, tile=tile_sz,
        tiles_per_split=tps, unroll=unroll, ragged=ragged)

    # Raise the scoped-VMEM limit to cover the double-buffered windows.
    in_window = 2 * tile_sz * (C * score_bytes + tgt_bytes)
    out_window = 2 * 3 * C * cw * 4
    vmem_limit = int(min(0.9 * vmem_cap,
                         max(32 * 1024 * 1024,
                             in_window + out_window + 8 * 1024 * 1024)))

    partials = pl.pallas_call(
        kernel,
        out_shape=jax.ShapeDtypeStruct((N * n_splits, 3, C, cw), jnp.float32),
        grid_spec=pltpu.PrefetchScalarGridSpec(
            num_scalar_prefetch=0,
            grid=(N, n_splits, tps),
            in_specs=[
                pl.BlockSpec((1, C, tile_sz), lambda n, h, p: (n, 0, h * tps + p)),
                pl.BlockSpec((1, 1, tile_sz), lambda n, h, p: (n, 0, h * tps + p)),
            ],
            out_specs=pl.BlockSpec((1, 3, C, cw),
                                   lambda n, h, p: (n * n_splits + h, 0, 0, 0)),
        ),
        compiler_params=pltpu.CompilerParams(
            dimension_semantics=("parallel", "parallel", "arbitrary"),
            vmem_limit_bytes=vmem_limit),
    )(scores, tgt)

    # Tiny epilogue in plain JAX: cross-lane / batch / split reduce + dice formula.
    sums = jnp.sum(partials, axis=(0, 3))            # (3, C)
    intersect, y_sum, z_sum = sums[0], sums[1], sums[2]
    dice = 1.0 - (2.0 * intersect + SMOOTH) / (z_sum + y_sum + SMOOTH)

    if weight is None:
        weight = [1.0] * n_classes
    w = jnp.asarray(weight, jnp.float32)
    return jnp.sum(dice * w) / n_classes


def dice_loss_ref(inputs, target, n_classes, weight=None, softmax=False):
    """Pure-JAX reference matching the PyTorch forward semantics."""
    if softmax:
        inputs = jax.nn.softmax(inputs, axis=1)
    onehot = jnp.stack(
        [(target == i).astype(jnp.float32) for i in range(n_classes)], axis=1)
    if weight is None:
        weight = [1.0] * n_classes
    loss = 0.0
    for i in range(n_classes):
        s = inputs[:, i]
        t = onehot[:, i]
        inter = jnp.sum(s * t)
        ysum = jnp.sum(t * t)
        zsum = jnp.sum(s * s)
        dice = 1.0 - (2.0 * inter + SMOOTH) / (zsum + ysum + SMOOTH)
        loss = loss + dice * weight[i]
    return loss / n_classes


if __name__ == "__main__":
    key = jax.random.PRNGKey(0)
    ok = True
    configs = [
        # (N, C, H, W, score_dtype)
        (2, 4, 16, 16, jnp.float32),   # HW=256: aligned, one tile per batch
        (2, 4, 16, 17, jnp.float32),   # HW=272: ragged tail + 2-way pixel split
        (1, 4, 32, 32, jnp.float32),   # HW=1024: multi-chunk fori_loop, batch of 1
        (2, 4, 16, 16, jnp.bfloat16),  # bf16 scores streamed, f32 accumulation
    ]
    for (N, C, H, W, dt) in configs:
        key, k_in, k_tg = jax.random.split(key, 3)
        inputs = jax.random.normal(k_in, (N, C, H, W), dtype=jnp.float32).astype(dt)
        target = jax.random.randint(k_tg, (N, H, W), 0, C, dtype=jnp.int32)

        for use_softmax in (False, True):
            out = jax.block_until_ready(
                dice_loss_pallas(inputs, target, C, softmax=use_softmax))
            # Reference computed on the same f32-upcast scores (kernel semantics).
            ref = jax.block_until_ready(
                dice_loss_ref(inputs.astype(jnp.float32), target, C,
                              softmax=use_softmax))
            # approx reciprocal (softmax path only) introduces ~1e-3 rel error.
            tol = dict(rtol=5e-3, atol=1e-3) if use_softmax else dict(rtol=1e-5, atol=1e-6)
            if not jnp.allclose(out, ref, **tol):
                ok = False
                print("MISMATCH", (N, C, H, W, str(dt)), use_softmax,
                      float(out), float(ref))

    if ok:
        print("KERNEL_OK")
</pallas_src>

<mosaic_0001>
module attributes {stable_mosaic.version = 11 : i64} {
  func.func @_dice_kernel(%arg0: i32, %arg1: i32, %arg2: i32, %arg3: memref<1x4x256xf32, #tpu.memory_space<vmem>>, %arg4: memref<1x1x256xi32, #tpu.memory_space<vmem>>, %arg5: memref<1x3x4x128xf32, #tpu.memory_space<vmem>>) attributes {dimension_semantics = [#tpu.dimension_semantics<parallel>, #tpu.dimension_semantics<parallel>, #tpu.dimension_semantics<arbitrary>], iteration_bounds = array<i64: 2, 1, 1>, scalar_prefetch = 0 : i64, scratch_operands = 0 : i64, tpu.core_type = #tpu.core_type<tc>, window_params = [{transform_indices = @transform_0, window_bounds = array<i64: 1, 4, 256>}, {transform_indices = @transform_1, window_bounds = array<i64: 1, 1, 256>}, {transform_indices = @transform_2, window_bounds = array<i64: 1, 3, 4, 128>}]} {
    %c0_i32 = arith.constant 0 : i32
    %0 = arith.cmpi eq, %arg2, %c0_i32 : i32
    %1 = arith.extui %0 : i1 to i32
    %c0_i32_0 = arith.constant 0 : i32
    %2 = arith.cmpi ne, %1, %c0_i32_0 : i32
    scf.if %2 {
      %cst_38 = arith.constant 0.000000e+00 : f32
      %61 = vector.broadcast %cst_38 : f32 to vector<1x3x4x128xf32>
      %c0_39 = arith.constant 0 : index
      %c0_40 = arith.constant 0 : index
      %c0_41 = arith.constant 0 : index
      %c0_42 = arith.constant 0 : index
      %62 = vector.load %arg5[%c0_39, %c0_40, %c0_41, %c0_42] : memref<1x3x4x128xf32, #tpu.memory_space<vmem>>, vector<1x3x4x128xf32>
      tpu.vector_store %arg5[%c0_39, %c0_40, %c0_41, %c0_42], %61 {strides = array<i32>} : memref<1x3x4x128xf32, #tpu.memory_space<vmem>>, vector<1x3x4x128xf32>,
    } else {
    }
    %3 = tpu.iota {dimensions = array<i32: 0>} : vector<4x128xi32>
    %cst = arith.constant 0.000000e+00 : f32
    %4 = vector.broadcast %cst : f32 to vector<4x128xf32>
    %c0_i32_1 = arith.constant 0 : i32
    %c128_i32 = arith.constant 128 : i32
    %5 = arith.muli %c0_i32_1, %c128_i32 : i32
    %6 = tpu.assume_multiple %5, 128 : i32
    %c0 = arith.constant 0 : index
    %c0_2 = arith.constant 0 : index
    %7 = arith.index_cast %6 : i32 to index
    %8 = vector.load %arg3[%c0, %c0_2, %7] : memref<1x4x256xf32, #tpu.memory_space<vmem>>, vector<1x4x128xf32>
    %9 = vector.shape_cast %8 : vector<1x4x128xf32> to vector<4x128xf32>
    %c0_3 = arith.constant 0 : index
    %c0_4 = arith.constant 0 : index
    %10 = arith.index_cast %6 : i32 to index
    %11 = vector.load %arg4[%c0_3, %c0_4, %10] : memref<1x1x256xi32, #tpu.memory_space<vmem>>, vector<1x1x128xi32>
    %12 = vector.shape_cast %11 : vector<1x1x128xi32> to vector<1x128xi32>
    %13 = vector.broadcast %12 : vector<1x128xi32> to vector<4x128xi32>
    %14 = arith.cmpi eq, %3, %13 : vector<4x128xi32>
    %cst_5 = arith.constant 0.000000e+00 : f32
    %15 = vector.broadcast %cst_5 : f32 to vector<4x128xf32>
    %16 = arith.select %14, %9, %15 : vector<4x128xi1>, vector<4x128xf32>
    %17 = arith.addf %4, %16 : vector<4x128xf32>
    %cst_6 = arith.constant 1.000000e+00 : f32
    %cst_7 = arith.constant 0.000000e+00 : f32
    %18 = vector.broadcast %cst_6 : f32 to vector<4x128xf32>
    %19 = vector.broadcast %cst_7 : f32 to vector<4x128xf32>
    %20 = arith.select %14, %18, %19 : vector<4x128xi1>, vector<4x128xf32>
    %21 = arith.addf %4, %20 : vector<4x128xf32>
    %22 = arith.mulf %9, %9 : vector<4x128xf32>
    %23 = arith.addf %4, %22 : vector<4x128xf32>
    %c1_i32 = arith.constant 1 : i32
    %c128_i32_8 = arith.constant 128 : i32
    %24 = arith.muli %c1_i32, %c128_i32_8 : i32
    %25 = tpu.assume_multiple %24, 128 : i32
    %c0_9 = arith.constant 0 : index
    %c0_10 = arith.constant 0 : index
    %26 = arith.index_cast %25 : i32 to index
    %27 = vector.load %arg3[%c0_9, %c0_10, %26] : memref<1x4x256xf32, #tpu.memory_space<vmem>>, vector<1x4x128xf32>
    %28 = vector.shape_cast %27 : vector<1x4x128xf32> to vector<4x128xf32>
    %c0_11 = arith.constant 0 : index
    %c0_12 = arith.constant 0 : index
    %29 = arith.index_cast %25 : i32 to index
    %30 = vector.load %arg4[%c0_11, %c0_12, %29] : memref<1x1x256xi32, #tpu.memory_space<vmem>>, vector<1x1x128xi32>
    %31 = vector.shape_cast %30 : vector<1x1x128xi32> to vector<1x128xi32>
    %32 = vector.broadcast %31 : vector<1x128xi32> to vector<4x128xi32>
    %33 = arith.cmpi eq, %3, %32 : vector<4x128xi32>
    %cst_13 = arith.constant 0.000000e+00 : f32
    %34 = vector.broadcast %cst_13 : f32 to vector<4x128xf32>
    %35 = arith.select %33, %28, %34 : vector<4x128xi1>, vector<4x128xf32>
    %36 = arith.addf %17, %35 : vector<4x128xf32>
    %cst_14 = arith.constant 1.000000e+00 : f32
    %cst_15 = arith.constant 0.000000e+00 : f32
    %37 = vector.broadcast %cst_14 : f32 to vector<4x128xf32>
    %38 = vector.broadcast %cst_15 : f32 to vector<4x128xf32>
    %39 = arith.select %33, %37, %38 : vector<4x128xi1>, vector<4x128xf32>
    %40 = arith.addf %21, %39 : vector<4x128xf32>
    %41 = arith.mulf %28, %28 : vector<4x128xf32>
    %42 = arith.addf %23, %41 : vector<4x128xf32>
    %c2_i32 = arith.constant 2 : i32
    %c0_16 = arith.constant 0 : index
    %c0_17 = arith.constant 0 : index
    %c0_18 = arith.constant 0 : index
    %c0_19 = arith.constant 0 : index
    %43 = vector.load %arg5[%c0_16, %c0_17, %c0_18, %c0_19] : memref<1x3x4x128xf32, #tpu.memory_space<vmem>>, vector<1x1x4x128xf32>
    %44 = vector.shape_cast %43 : vector<1x1x4x128xf32> to vector<4x128xf32>
    %45 = arith.addf %44, %36 : vector<4x128xf32>
    %c0_20 = arith.constant 0 : index
    %c0_21 = arith.constant 0 : index
    %c0_22 = arith.constant 0 : index
    %c0_23 = arith.constant 0 : index
    %46 = vector.load %arg5[%c0_20, %c0_21, %c0_22, %c0_23] : memref<1x3x4x128xf32, #tpu.memory_space<vmem>>, vector<1x1x4x128xf32>
    %47 = vector.shape_cast %46 : vector<1x1x4x128xf32> to vector<4x128xf32>
    %48 = vector.shape_cast %45 : vector<4x128xf32> to vector<1x1x4x128xf32>
    tpu.vector_store %arg5[%c0_20, %c0_21, %c0_22, %c0_23], %48 {strides = array<i32>} : memref<1x3x4x128xf32, #tpu.memory_space<vmem>>, vector<1x1x4x128xf32>,
    %c0_24 = arith.constant 0 : index
    %c1 = arith.constant 1 : index
    %c0_25 = arith.constant 0 : index
    %c0_26 = arith.constant 0 : index
    %49 = vector.load %arg5[%c0_24, %c1, %c0_25, %c0_26] : memref<1x3x4x128xf32, #tpu.memory_space<vmem>>, vector<1x1x4x128xf32>
    %50 = vector.shape_cast %49 : vector<1x1x4x128xf32> to vector<4x128xf32>
    %51 = arith.addf %50, %40 : vector<4x128xf32>
    %c0_27 = arith.constant 0 : index
    %c1_28 = arith.constant 1 : index
    %c0_29 = arith.constant 0 : index
    %c0_30 = arith.constant 0 : index
    %52 = vector.load %arg5[%c0_27, %c1_28, %c0_29, %c0_30] : memref<1x3x4x128xf32, #tpu.memory_space<vmem>>, vector<1x1x4x128xf32>
    %53 = vector.shape_cast %52 : vector<1x1x4x128xf32> to vector<4x128xf32>
    %54 = vector.shape_cast %51 : vector<4x128xf32> to vector<1x1x4x128xf32>
    tpu.vector_store %arg5[%c0_27, %c1_28, %c0_29, %c0_30], %54 {strides = array<i32>} : memref<1x3x4x128xf32, #tpu.memory_space<vmem>>, vector<1x1x4x128xf32>,
    %c0_31 = arith.constant 0 : index
    %c2 = arith.constant 2 : index
    %c0_32 = arith.constant 0 : index
    %c0_33 = arith.constant 0 : index
    %55 = vector.load %arg5[%c0_31, %c2, %c0_32, %c0_33] : memref<1x3x4x128xf32, #tpu.memory_space<vmem>>, vector<1x1x4x128xf32>
    %56 = vector.shape_cast %55 : vector<1x1x4x128xf32> to vector<4x128xf32>
    %57 = arith.addf %56, %42 : vector<4x128xf32>
    %c0_34 = arith.constant 0 : index
    %c2_35 = arith.constant 2 : index
    %c0_36 = arith.constant 0 : index
    %c0_37 = arith.constant 0 : index
    %58 = vector.load %arg5[%c0_34, %c2_35, %c0_36, %c0_37] : memref<1x3x4x128xf32, #tpu.memory_space<vmem>>, vector<1x1x4x128xf32>
    %59 = vector.shape_cast %58 : vector<1x1x4x128xf32> to vector<4x128xf32>
    %60 = vector.shape_cast %57 : vector<4x128xf32> to vector<1x1x4x128xf32>
    tpu.vector_store %arg5[%c0_34, %c2_35, %c0_36, %c0_37], %60 {strides = array<i32>} : memref<1x3x4x128xf32, #tpu.memory_space<vmem>>, vector<1x1x4x128xf32>,
    return
  }
  func.func @transform_0(%arg0: i32, %arg1: i32, %arg2: i32) -> (i32, i32, i32) {
    %c1_i32 = arith.constant 1 : i32
    %0 = arith.muli %arg1, %c1_i32 : i32
    %1 = arith.addi %0, %arg2 : i32
    %c0_i32 = arith.constant 0 : i32
    %c0_i32_0 = arith.constant 0 : i32
    return %arg0, %c0_i32, %1 : i32, i32, i32
  }
  func.func @transform_1(%arg0: i32, %arg1: i32, %arg2: i32) -> (i32, i32, i32) {
    %c1_i32 = arith.constant 1 : i32
    %0 = arith.muli %arg1, %c1_i32 : i32
    %1 = arith.addi %0, %arg2 : i32
    %c0_i32 = arith.constant 0 : i32
    %c0_i32_0 = arith.constant 0 : i32
    return %arg0, %c0_i32, %1 : i32, i32, i32
  }
  func.func @transform_2(%arg0: i32, %arg1: i32, %arg2: i32) -> (i32, i32, i32, i32) {
    %c1_i32 = arith.constant 1 : i32
    %0 = arith.muli %arg0, %c1_i32 : i32
    %1 = arith.addi %0, %arg1 : i32
    %c0_i32 = arith.constant 0 : i32
    %c0_i32_0 = arith.constant 0 : i32
    %c0_i32_1 = arith.constant 0 : i32
    %c0_i32_2 = arith.constant 0 : i32
    return %1, %c0_i32, %c0_i32_0, %c0_i32_1 : i32, i32, i32, i32
  }
}

</mosaic_0001>

<llo_original>
// kernel: tpu_custom_call.1
$region0: #{tpu_custom_call.1}
  #allocation0 [shape = 'u32[]', space=smem, size = 0x4, offset = 0x4, fixed_abs, tag = 'smem constant byte address 0x4 - core index']
  #allocation1 [shape = 'u32[144,128]{1,0:T(1,128)}', space=vmem, size = 0x12000, scoped, tag = 'internal scratch']
  %s0 = inlined_call_operand.hbm [shape: f32[2,4,256], index: 0, kind: input, shape index: {}]
  %s1 = inlined_call_operand.hbm [shape: s32[2,1,256], index: 1, kind: input, shape index: {}]
  %s2 = inlined_call_operand.hbm [shape: f32[2,3,4,128], index: 2, kind: output, shape index: {}]
  %s3 = sld [smem:[#allocation0]]
  $region53: #{tpu_custom_call.1} parent=0
    _
  %s5 = ssub.s32 1, %s3
  %s6 = scalar_select 0, %s5, %s3
  $region1: #{tpu_custom_call.1} parent=0
    #allocation2 [shape = 'u8[8192]{0}', space=vmem, size = 0x2000, scoped, tag = 'input window, operand 0']
    #allocation3 [shape = 's32[2]{0}', space=sflag, size = 0x8, scoped, tag = 'scoped memory for tpu_custom_call.1']
    #allocation4 [shape = 's32[2]{0}', space=sflag, size = 0x8, scoped, tag = 'scoped memory for tpu_custom_call.1']
    #allocation5 [shape = 'u8[2048]{0}', space=vmem, size = 0x800, scoped, tag = 'input window, operand 1']
    #allocation6 [shape = 's32[2]{0}', space=sflag, size = 0x8, scoped, tag = 'scoped memory for tpu_custom_call.1']
    #allocation7 [shape = 'u8[12288]{0}', space=vmem, size = 0x3000, scoped, tag = 'output window, operand 0']
    %7 = vsyncpa [#allocation3], 0
    %s8 = scalar_lea.sflag [#allocation3], 1
    %9 = vsyncpa %s8, 0
    %10 = vsyncpa [#allocation6], 0
    %s11 = scalar_lea.sflag [#allocation6], 1
    %12 = vsyncpa %s11, 0
    %13 = vsyncpa [#allocation4], 0
    %s14 = scalar_lea.sflag [#allocation4], 1
    %15 = vsyncpa %s14, 0
    loop: start=0, step=1, limit=4
    $region2: #{tpu_custom_call.1} parent=1 // loop_pre_header
      _
    $region3: #{tpu_custom_call.1} parent=1 // loop_header
      %s17 = sphi 0, %s21
      %p18 = scmp.ge.s32.totalorder %s17, 4
      %s24 = sphi 0, %s43
      %s25 = sphi 0, %s39
      %s26 = sphi 0, %s35
      %s27 = sphi 0, %s24
      %s28 = sphi 0, %s25
      %s29 = sphi 0, %s26
      %s30 = sphi 0, %s27
      %s31 = sphi 0, %s28
      %s32 = sphi 0, %s29
      %s50 = sphi 0, %s52
      %s53 = sphi 0, %s50
      %s54 = sphi 0, %s53
      %s70 = sphi 0, %s54
      %s80 = sphi 0, %s82
      %s83 = sphi 0, %s80
      %s84 = sphi 0, %s83
      %s100 = sphi 0, %s84
      %s108 = sphi 0, %s110
      %s111 = sphi 0, %s108
      %s112 = sphi 0, %s111
      %s128 = sphi 0, %s112
    $region4: #{tpu_custom_call.1} parent=1 // loop_header_branch
      %20 = sbr.rel (%p18) target = $region8
    $region5: #{tpu_custom_call.1} parent=1 // loop_body
      %s22 = ssub.s32 %s17, 1
      %s23 = ssub.s32 %s17, 2
      %s33 = sadd.s32 1, %s26
      %p34 = scmp.ge.s32.totalorder %s33, 1
      %s35 = scalar_select %p34, 0, %s33
      %s36 = sadd.s32 1, %s25
      %s37 = scalar_select %p34, %s36, %s25
      %p38 = scmp.ge.s32.totalorder %s37, 1
      %s39 = scalar_select %p38, 0, %s37
      %s40 = sadd.s32 1, %s24
      %s41 = scalar_select %p38, %s40, %s24
      %p42 = scmp.ge.s32.totalorder %s41, 2
      %s43 = scalar_select %p42, 0, %s41
      %s44 = sadd.s32 %s25, %s26
      %s45 = sadd.s32 %s39, %s35
      %s46 = ssub.s32 %s24, %s43
      %s47 = ssub.s32 %s44, %s45
      %s48 = sor.u32 %s46, %s47
      %p49 = scmp.eq.s32.totalorder %s48, 0
      %s51 = sadd.s32 %s50, 1
      %s52 = scalar_select %p49, %s50, %s51
      %p55 = pneg %p49
      %p56 = scmp.eq.s32.totalorder %s17, 1
      %p57 = por %p55, %p56
      %p58 = scmp.ne.s32.totalorder %s50, %s53
      %p59 = scmp.eq.s32.totalorder %s17, 0
      %p60 = por %p58, %p59
      %p61 = scmp.ne.s32.totalorder %s50, %s53
      %p62 = scmp.eq.s32.totalorder %s22, 1
      %p63 = por %p61, %p62
      %p64 = scmp.ne.s32.totalorder %s53, %s54
      %p65 = scmp.eq.s32.totalorder %s22, 0
      %p66 = por %p64, %p65
      %p67 = scmp.ne.s32.totalorder %s53, %s54
      %p68 = scmp.eq.s32.totalorder %s23, 1
      %p69 = por %p67, %p68
      %p71 = scmp.ne.s32.totalorder %s54, %s70
      %p72 = scmp.eq.s32.totalorder %s23, 0
      %p73 = por %p71, %p72
      %s74 = sadd.s32 %s25, %s26
      %s75 = sadd.s32 %s39, %s35
      %s76 = ssub.s32 %s24, %s43
      %s77 = ssub.s32 %s74, %s75
      %s78 = sor.u32 %s76, %s77
      %p79 = scmp.eq.s32.totalorder %s78, 0
      %s81 = sadd.s32 %s80, 1
      %s82 = scalar_select %p79, %s80, %s81
      %p85 = pneg %p79
      %p86 = scmp.eq.s32.totalorder %s17, 1
      %p87 = por %p85, %p86
      %p88 = scmp.ne.s32.totalorder %s80, %s83
      %p89 = scmp.eq.s32.totalorder %s17, 0
      %p90 = por %p88, %p89
      %p91 = scmp.ne.s32.totalorder %s80, %s83
      %p92 = scmp.eq.s32.totalorder %s22, 1
      %p93 = por %p91, %p92
      %p94 = scmp.ne.s32.totalorder %s83, %s84
      %p95 = scmp.eq.s32.totalorder %s22, 0
      %p96 = por %p94, %p95
      %p97 = scmp.ne.s32.totalorder %s83, %s84
      %p98 = scmp.eq.s32.totalorder %s23, 1
      %p99 = por %p97, %p98
      %p101 = scmp.ne.s32.totalorder %s84, %s100
      %p102 = scmp.eq.s32.totalorder %s23, 0
      %p103 = por %p101, %p102
      %s104 = sadd.s32 %s24, %s25
      %s105 = sadd.s32 %s43, %s39
      %s106 = ssub.s32 %s104, %s105
      %p107 = scmp.eq.s32.totalorder %s106, 0
      %s109 = sadd.s32 %s108, 1
      %s110 = scalar_select %p107, %s108, %s109
      %p113 = pneg %p107
      %p114 = scmp.eq.s32.totalorder %s17, 1
      %p115 = por %p113, %p114
      %p116 = scmp.ne.s32.totalorder %s108, %s111
      %p117 = scmp.eq.s32.totalorder %s17, 0
      %p118 = por %p116, %p117
      %p119 = scmp.ne.s32.totalorder %s108, %s111
      %p120 = scmp.eq.s32.totalorder %s22, 1
      %p121 = por %p119, %p120
      %p122 = scmp.ne.s32.totalorder %s111, %s112
      %p123 = scmp.eq.s32.totalorder %s22, 0
      %p124 = por %p122, %p123
      %p125 = scmp.ne.s32.totalorder %s111, %s112
      %p126 = scmp.eq.s32.totalorder %s23, 1
      %p127 = por %p125, %p126
      %p129 = scmp.ne.s32.totalorder %s112, %s128
      %p130 = scmp.eq.s32.totalorder %s23, 0
      %p131 = por %p129, %p130
      %p132 = scmp.le.s32.totalorder 1, %s17
      %p133 = scmp.lt.s32.totalorder %s17, 3
      %p134 = pnand %p132, %p133
      %p135 = pneg %p134
      // Predicated region
      $region9: #{tpu_custom_call.1} parent=5 // pred_check
        _
      $region10: #{tpu_custom_call.1} parent=5 // pred_check_branch
        %137 = sbr.rel (%p134) target = $region12
      $region11: #{tpu_custom_call.1} parent=5 // pred_region
        %s138 = ssub.s32 %s17, 1
      $region12: #{tpu_custom_call.1} parent=5 // pred_fallthru
        _
      %p139 = scmp.lt.s32.totalorder %s17, 2
      // Predicated region
      $region13: #{tpu_custom_call.1} parent=5 // pred_check
        %p140 = pneg %p139
      $region14: #{tpu_custom_call.1} parent=5 // pred_check_branch
        %142 = sbr.rel (%p140) target = $region16
      $region15: #{tpu_custom_call.1} parent=5 // pred_region
        // Predicated region
        $region17: #{tpu_custom_call.1} parent=15 // pred_check
          %p143 = pneg %p60
        $region18: #{tpu_custom_call.1} parent=15 // pred_check_branch
          %145 = sbr.rel (%p143) target = $region20
        $region19: #{tpu_custom_call.1} parent=15 // pred_region
          %s146 = sand.u32 %s50, 1
          %s147 = scalar_lea.sflag [#allocation3], %s146
          %s148 = sand.u32 %s50, 1
          %s149 = smul.addr %s148, 8
          %s150 = scalar_lea.vmem [#allocation2], %s149
          %s151 = sadd.s32 %s25, %s26
          %s152 = smul.u32 2, %s151
          %s154 = ssub.s32 128, 128
          %155 = vsyncadd %s147, %s154
          %s156 = smul.addr %s24, 2
          %s157 = sadd.s32 %s152, %s156
          %s158 = smul.addr %s157, 64
          %s159 = scalar_lea.hbm %s0, %s158
          %s161 = sshll.u32 %s150, 4
          %s162 = int_to_ptr.vmem [resolvable:$true] %s161
          %164 = dma.hbm_to_vmem [thread:$0]  %s159, 128, %s162, %s147
        $region20: #{tpu_custom_call.1} parent=15 // pred_fallthru
          _
        // Predicated region
        $region21: #{tpu_custom_call.1} parent=15 // pred_check
          %p165 = pneg %p90
        $region22: #{tpu_custom_call.1} parent=15 // pred_check_branch
          %167 = sbr.rel (%p165) target = $region24
        $region23: #{tpu_custom_call.1} parent=15 // pred_region
          %s168 = sand.u32 %s80, 1
          %s169 = scalar_lea.sflag [#allocation6], %s168
          %s170 = sand.u32 %s80, 1
          %s171 = smul.addr %s170, 2
          %s172 = scalar_lea.vmem [#allocation5], %s171
          %s173 = sadd.s32 %s25, %s26
          %s174 = smul.u32 2, %s173
          %s176 = ssub.s32 32, 32
          %177 = vsyncadd %s169, %s176
          %s178 = smul.addr %s24, 2
          %s179 = sadd.s32 %s174, %s178
          %s180 = smul.addr %s179, 16
          %s181 = scalar_lea.hbm %s1, %s180
          %s183 = sshll.u32 %s172, 4
          %s184 = int_to_ptr.vmem [resolvable:$true] %s183
          %186 = dma.hbm_to_vmem [thread:$0]  %s181, 32, %s184, %s169
        $region24: #{tpu_custom_call.1} parent=15 // pred_fallthru
          _
      $region16: #{tpu_custom_call.1} parent=5 // pred_fallthru
        _
      %p187 = scmp.le.s32.totalorder 1, %s17
      %p188 = scmp.lt.s32.totalorder %s17, 3
      %p189 = pnand %p187, %p188
      %p190 = pneg %p189
      // Predicated region
      $region25: #{tpu_custom_call.1} parent=5 // pred_check
        _
      $region26: #{tpu_custom_call.1} parent=5 // pred_check_branch
        %192 = sbr.rel (%p189) target = $region28
      $region27: #{tpu_custom_call.1} parent=5 // pred_region
        %s193 = ssub.s32 %s17, 1
        %s194 = sand.u32 %s53, 1
        %s195 = scalar_lea.sflag [#allocation3], %s194
        %s196 = sand.u32 %s53, 1
        %s197 = smul.addr %s196, 8
        %s198 = scalar_lea.vmem [#allocation2], %s197
        // Predicated region
        $region29: #{tpu_custom_call.1} parent=27 // pred_check
          %p199 = pneg %p66
        $region30: #{tpu_custom_call.1} parent=27 // pred_check_branch
          %201 = sbr.rel (%p199) target = $region32
        $region31: #{tpu_custom_call.1} parent=27 // pred_region
          %202 = dma.done %s195, 128
        $region32: #{tpu_custom_call.1} parent=27 // pred_fallthru
          _
        %s203 = sand.u32 %s83, 1
        %s204 = scalar_lea.sflag [#allocation6], %s203
        %s205 = sand.u32 %s83, 1
        %s206 = smul.addr %s205, 2
        %s207 = scalar_lea.vmem [#allocation5], %s206
        // Predicated region
        $region33: #{tpu_custom_call.1} parent=27 // pred_check
          %p208 = pneg %p96
        $region34: #{tpu_custom_call.1} parent=27 // pred_check_branch
          %210 = sbr.rel (%p208) target = $region36
        $region35: #{tpu_custom_call.1} parent=27 // pred_region
          %211 = dma.done %s204, 32
        $region36: #{tpu_custom_call.1} parent=27 // pred_fallthru
          _
        %s212 = sand.u32 %s53, 1
        %s213 = scalar_lea.sflag [#allocation3], %s212
        %s214 = sand.u32 %s53, 1
        %s215 = smul.addr %s214, 8
        %s216 = scalar_lea.vmem [#allocation2], %s215
        %p217 = pneg %p66
        %p218 = pneg %p63
        %s219 = sand.u32 %s83, 1
        %s220 = scalar_lea.sflag [#allocation6], %s219
        %s221 = sand.u32 %s83, 1
        %s222 = smul.addr %s221, 2
        %s223 = scalar_lea.vmem [#allocation5], %s222
        %p224 = pneg %p96
        %p225 = pneg %p93
        %p226 = pneg %p124
        %p227 = pneg %p121
        %s228 = sand.u32 %s111, 1
        %s229 = scalar_lea.sflag [#allocation4], %s228
        %s230 = sand.u32 %s111, 1
        %s231 = smul.addr %s230, 12
        %s232 = scalar_lea.vmem [#allocation7], %s231
        %s233 = sadd.s32 %s28, %s29
        %s234 = smul.u32 2, %s233
        %s235 = sadd.s32 %s28, %s29
        %s236 = smul.u32 2, %s235
        %s237 = sadd.s32 %s27, %s28
        %p238 = scmp.eq.s32.totalorder %s29, 0
        // Predicated region
        $region37: #{tpu_custom_call.1} parent=27 // pred_check
          %p239 = pneg %p238
        $region38: #{tpu_custom_call.1} parent=27 // pred_check_branch
          %241 = sbr.rel (%p239) target = $region40
        $region39: #{tpu_custom_call.1} parent=27 // pred_region
          %242 = vst [vmem:[%s232] sm:$0xf] 0.0
          %243 = vst [vmem:[%s232 + $0x4] sm:$0xf] 0.0
          %244 = vst [vmem:[%s232 + $0x8] sm:$0xf] 0.0
        $region40: #{tpu_custom_call.1} parent=27 // pred_fallthru
          _
        %v245 = vlaneseq
        %v246 = vshrl.u32 %v245, 7
        %v247 = vld [vmem:[%s198] sm:$0xf]
        %v248 = vld [vmem:[%s207] sm:$0x1]
        %v249 = vlaneseq
        %v250 = vshrl.u32 %v249, 7
        %v251 = vsub.s32 0, %v250
        %v252 = vrot.slane %v248, %v251
        %vm253 = vcmp.eq.s32.totalorder %v246, %v252
        %v254 = vsel %vm253, %v247, 0.0
        %v255 = vadd.f32 %v254, 0.0
        %v256 = vsel %vm253, 1.0, 0.0
        %v257 = vadd.f32 %v256, 0.0
        %v258 = vmul.f32 %v247, %v247
        %v259 = vadd.f32 %v258, 0.0
        %s260 = scalar_lea.vmem %s198, 4 [#allocation2]
        %v261 = vld [vmem:[%s260] sm:$0xf]
        %s262 = scalar_lea.vmem %s207, 1 [#allocation5]
        %v263 = vld [vmem:[%s262] sm:$0x1]
        %v264 = vlaneseq
        %v265 = vshrl.u32 %v264, 7
        %v266 = vsub.s32 0, %v265
        %v267 = vrot.slane %v263, %v266
        %vm268 = vcmp.eq.s32.totalorder %v246, %v267
        %v269 = vsel %vm268, %v261, 0.0
        %v270 = vadd.f32 %v255, %v269
        %v271 = vsel %vm268, 1.0, 0.0
        %v272 = vadd.f32 %v257, %v271
        %v273 = vmul.f32 %v261, %v261
        %v274 = vadd.f32 %v259, %v273
        %v275 = vld [vmem:[%s232] sm:$0xf]
        %v276 = vadd.f32 %v275, %v270
        %277 = vst [vmem:[%s232] sm:$0xf] %v276
        %s278 = scalar_lea.vmem %s232, 4 [#allocation7]
        %v279 = vld [vmem:[%s278] sm:$0xf]
        %v280 = vadd.f32 %v279, %v272
        %281 = vst [vmem:[%s278] sm:$0xf] %v280
        %s282 = scalar_lea.vmem %s232, 8 [#allocation7]
        %v283 = vld [vmem:[%s282] sm:$0xf]
        %v284 = vadd.f32 %v283, %v274
        %285 = vst [vmem:[%s282] sm:$0xf] %v284
        %s286 = sand.u32 %s111, 1
        %s287 = scalar_lea.sflag [#allocation4], %s286
        %s288 = sand.u32 %s111, 1
        %s289 = smul.addr %s288, 12
        %s290 = scalar_lea.vmem [#allocation7], %s289
        // Predicated region
        $region41: #{tpu_custom_call.1} parent=27 // pred_check
          %p291 = pneg %p121
        $region42: #{tpu_custom_call.1} parent=27 // pred_check_branch
          %293 = sbr.rel (%p291) target = $region44
        $region43: #{tpu_custom_call.1} parent=27 // pred_region
          %s294 = sadd.s32 %s27, %s28
          %s296 = ssub.s32 192, 192
          %297 = vsyncadd %s287, %s296
          %s298 = smul.addr %s294, 3
          %s299 = smul.addr %s298, 64
          %s300 = scalar_lea.hbm %s2, %s299
          %s301 = sshll.u32 %s290, 4
          %s302 = int_to_ptr.vmem [resolvable:$true] %s301
          %307 = dma.vmem_to_hbm [thread:$0]  %s302, 192, %s300, %s287, 64, 64, 4
        $region44: #{tpu_custom_call.1} parent=27 // pred_fallthru
          _
      $region28: #{tpu_custom_call.1} parent=5 // pred_fallthru
        _
      %p308 = scmp.le.s32.totalorder 2, %s17
      // Predicated region
      $region45: #{tpu_custom_call.1} parent=5 // pred_check
        %p309 = pneg %p308
      $region46: #{tpu_custom_call.1} parent=5 // pred_check_branch
        %311 = sbr.rel (%p309) target = $region48
      $region47: #{tpu_custom_call.1} parent=5 // pred_region
        %s312 = ssub.s32 %s17, 2
        // Predicated region
        $region49: #{tpu_custom_call.1} parent=47 // pred_check
          %p313 = pneg %p127
        $region50: #{tpu_custom_call.1} parent=47 // pred_check_branch
          %315 = sbr.rel (%p313) target = $region52
        $region51: #{tpu_custom_call.1} parent=47 // pred_region
          %s316 = sand.u32 %s112, 1
          %s317 = scalar_lea.sflag [#allocation4], %s316
          %s318 = sand.u32 %s112, 1
          %s319 = smul.addr %s318, 12
          %s320 = scalar_lea.vmem [#allocation7], %s319
          %321 = dma.done %s317, 192
        $region52: #{tpu_custom_call.1} parent=47 // pred_fallthru
          _
      $region48: #{tpu_custom_call.1} parent=5 // pred_fallthru
        _
    $region6: #{tpu_custom_call.1} parent=1 // loop_footer
      %s21 = sadd.s32 1, %s17
    $region7: #{tpu_custom_call.1} parent=1 // loop_footer_branch
      %16 = sbr.rel target = $region3
    $region8: #{tpu_custom_call.1} parent=1 // loop_exit
      _
    %322 = vsyncpa [#allocation3], 1
    %s323 = scalar_lea.sflag [#allocation3], 1
    %324 = vsyncpa %s323, 1
    %325 = vsyncpa [#allocation6], 1
    %s326 = scalar_lea.sflag [#allocation6], 1
    %327 = vsyncpa %s326, 1
    %328 = vsyncpa [#allocation4], 1
    %s329 = scalar_lea.sflag [#allocation4], 1
    %330 = vsyncpa %s329, 1

</llo_original>
